<compile_context>
chip_gen: v7x
topology: tpu7x:2x2x1
jax: 0.10.0
libtpu: 0.0.40
codegen_flags: <defaults>
</compile_context>

<pallas_src>
import jax
import jax.numpy as jnp
from jax import lax
from jax.experimental import pallas as pl
from jax.experimental.pallas import tpu as pltpu


def _round_up(x, m):
    return ((x + m - 1) // m) * m


# ---------------------------------------------------------------------------
# Kernel 1:  G = V @ V.T   (bf16 MXU, f32 accum), fused per-row inverse L2 norm
#            inv[i] = rsqrt(sum_j G[i, j]^2 + eps)
# Grid = (M/tm, M/tn, K/tk); i "parallel", j/k "arbitrary" (running reductions).
# ---------------------------------------------------------------------------
def _gram_inv_norm_kernel(ar_ref, ac_ref, o_ref, inv_ref, acc_ref, sq_ref):
    j = pl.program_id(1)
    k = pl.program_id(2)
    nj = pl.num_programs(1)
    nk = pl.num_programs(2)

    @pl.when(k == 0)
    def _():
        acc_ref[...] = jnp.zeros_like(acc_ref)

    @pl.when(jnp.logical_and(j == 0, k == 0))
    def _():
        sq_ref[...] = jnp.zeros_like(sq_ref)

    acc_ref[...] += lax.dot_general(
        ar_ref[...], ac_ref[...],
        dimension_numbers=(((1,), (1,)), ((), ())),   # contract last axis of both
        preferred_element_type=jnp.float32,
    )

    @pl.when(k == nk - 1)
    def _():
        c = acc_ref[...]
        o_ref[...] = c.astype(o_ref.dtype)
        # padded columns are exactly zero (zero-padded rows of V) -> contribute 0
        sq_ref[...] += jnp.sum(c * c, axis=1, keepdims=True)

    @pl.when(jnp.logical_and(k == nk - 1, j == nj - 1))
    def _():
        inv_ref[...] = lax.rsqrt(sq_ref[...] + 1e-12)   # EUP rsqrt; eps avoids NaN


def gram_inv_norm(v, *, tm_target=256, tn_target=256, tk_target=512):
    """Return (V @ V.T, per-row inverse L2 norm of V @ V.T)."""
    M, K = v.shape
    tm = min(tm_target, _round_up(M, 8))
    tn = min(tn_target, _round_up(M, 128))
    tk = min(tk_target, _round_up(K, 128))
    Mr, Mc, Kp = _round_up(M, tm), _round_up(M, tn), _round_up(K, tk)

    vb = v.astype(jnp.bfloat16)
    a_rows = jnp.pad(vb, ((0, Mr - M), (0, Kp - K)))   # i-axis view
    a_cols = jnp.pad(vb, ((0, Mc - M), (0, Kp - K)))   # j-axis view (same data)

    gram, inv = pl.pallas_call(
        _gram_inv_norm_kernel,
        out_shape=(jax.ShapeDtypeStruct((Mr, Mc), jnp.float32),
                   jax.ShapeDtypeStruct((Mr, 1), jnp.float32)),
        grid_spec=pltpu.PrefetchScalarGridSpec(
            num_scalar_prefetch=0,
            grid=(Mr // tm, Mc // tn, Kp // tk),
            in_specs=[
                pl.BlockSpec((tm, tk), lambda i, j, k: (i, k)),
                pl.BlockSpec((tn, tk), lambda i, j, k: (j, k)),
            ],
            out_specs=[
                pl.BlockSpec((tm, tn), lambda i, j, k: (i, j)),
                pl.BlockSpec((tm, 1), lambda i, j, k: (i, 0)),
            ],
            scratch_shapes=[pltpu.VMEM((tm, tn), jnp.float32),
                            pltpu.VMEM((tm, 1), jnp.float32)],
        ),
        compiler_params=pltpu.CompilerParams(
            dimension_semantics=("parallel", "arbitrary", "arbitrary")),
        cost_estimate=pl.CostEstimate(
            flops=2 * Mr * Mc * Kp,
            transcendentals=0,
            bytes_accessed=(Mr + Mc) * Kp * 2 + Mr * Mc * 4),
    )(a_rows, a_cols)
    return gram[:M, :M], inv[:M]          # (M, M) f32, (M, 1) f32


# ---------------------------------------------------------------------------
# Kernel 2:  C = (diag(inv_a) @ A) @ (diag(inv_b) @ B).T  with K-tiling, plus a
#            fused per-row argmax over the valid columns (first-max semantics,
#            identical to jnp.argmax / torch.argmax on the stored matrix).
# ---------------------------------------------------------------------------
def sim_with_argmax(a, b, inv_a, inv_b, *, tm_target=256, tn_target=256,
                    tk_target=512):
    M, K = a.shape
    N, K2 = b.shape
    assert K == K2, (a.shape, b.shape)

    tm = min(tm_target, _round_up(M, 8))
    tn = min(tn_target, _round_up(N, 128))
    tk = min(tk_target, _round_up(K, 128))
    Mp, Np, Kp = _round_up(M, tm), _round_up(N, tn), _round_up(K, tk)

    a_p = jnp.pad(a.astype(jnp.bfloat16), ((0, Mp - M), (0, Kp - K)))
    b_p = jnp.pad(b.astype(jnp.bfloat16), ((0, Np - N), (0, Kp - K)))
    inv_a_p = jnp.pad(jnp.asarray(inv_a, jnp.float32).reshape(M, 1),
                      ((0, Mp - M), (0, 0)))
    inv_b_p = jnp.pad(jnp.asarray(inv_b, jnp.float32).reshape(N, 1),
                      ((0, Np - N), (0, 0))).reshape(1, Np)

    n_valid = N                       # static bound; masks padded columns in argmax
    int_big = jnp.iinfo(jnp.int32).max

    def kernel(a_ref, b_ref, ia_ref, ib_ref, o_ref, amax_ref,
               acc_ref, mx_ref, ix_ref):
        j = pl.program_id(1)
        k = pl.program_id(2)
        nj = pl.num_programs(1)
        nk = pl.num_programs(2)

        @pl.when(k == 0)
        def _():
            acc_ref[...] = jnp.zeros_like(acc_ref)

        @pl.when(jnp.logical_and(j == 0, k == 0))
        def _():
            mx_ref[...] = jnp.full_like(mx_ref, -jnp.inf)
            ix_ref[...] = jnp.zeros_like(ix_ref)

        acc_ref[...] += lax.dot_general(
            a_ref[...], b_ref[...],
            dimension_numbers=(((1,), (1,)), ((), ())),
            preferred_element_type=jnp.float32,
        )

        @pl.when(k == nk - 1)
        def _():
            # fused normalization epilogue
            c = acc_ref[...] * ia_ref[...] * ib_ref[...]
            o_ref[...] = c.astype(o_ref.dtype)
            # fused running argmax over the N tile axis (first-max-index semantics)
            cols = lax.broadcasted_iota(jnp.int32, c.shape, 1) + j * tn
            vals = jnp.where(cols < n_valid, c, -jnp.inf)
            tile_max = jnp.max(vals, axis=1, keepdims=True)
            tile_idx = jnp.min(jnp.where(vals == tile_max, cols, int_big),
                               axis=1, keepdims=True)
            better = tile_max > mx_ref[...]            # strict > keeps earliest tile
            ix_ref[...] = jnp.where(better, tile_idx, ix_ref[...])
            mx_ref[...] = jnp.where(better, tile_max, mx_ref[...])

        @pl.when(jnp.logical_and(k == nk - 1, j == nj - 1))
        def _():
            amax_ref[...] = ix_ref[...]

    sims, amax = pl.pallas_call(
        kernel,
        out_shape=(jax.ShapeDtypeStruct((Mp, Np), jnp.float32),
                   jax.ShapeDtypeStruct((Mp, 1), jnp.int32)),
        grid_spec=pltpu.PrefetchScalarGridSpec(
            num_scalar_prefetch=0,
            grid=(Mp // tm, Np // tn, Kp // tk),
            in_specs=[
                pl.BlockSpec((tm, tk), lambda i, j, k: (i, k)),
                pl.BlockSpec((tn, tk), lambda i, j, k: (j, k)),
                pl.BlockSpec((tm, 1), lambda i, j, k: (i, 0)),
                pl.BlockSpec((1, tn), lambda i, j, k: (0, j)),
            ],
            out_specs=[
                pl.BlockSpec((tm, tn), lambda i, j, k: (i, j)),
                pl.BlockSpec((tm, 1), lambda i, j, k: (i, 0)),
            ],
            scratch_shapes=[pltpu.VMEM((tm, tn), jnp.float32),
                            pltpu.VMEM((tm, 1), jnp.float32),
                            pltpu.VMEM((tm, 1), jnp.int32)],
        ),
        compiler_params=pltpu.CompilerParams(
            dimension_semantics=("parallel", "arbitrary", "arbitrary")),
        cost_estimate=pl.CostEstimate(
            flops=2 * Mp * Np * Kp,
            transcendentals=0,
            bytes_accessed=Mp * Kp * 2 + Np * Kp * 2 + Mp * Np * 4),
    )(a_p, b_p, inv_a_p, inv_b_p)
    return sims[:M, :N], amax[:M, 0]      # (M, N) f32, (M,) int32


# ---------------------------------------------------------------------------
# Module port
# ---------------------------------------------------------------------------
class UnsupervisedInitArtetxe:
    def __init__(self, lang_source, lang_target, vectors_source, vectors_target,
                 stoi_source, itos_target):
        self.lang_source = lang_source
        self.lang_target = lang_target
        self.stoi = stoi_source
        self.itos_target = itos_target

        v1 = jnp.asarray(vectors_source, jnp.float32)
        v2 = jnp.asarray(vectors_target, jnp.float32)

        # intra-lingual Gram matrices + fused per-row inverse L2 norms.
        # (L2 norm is permutation invariant, so the norm of the *sorted* rows used
        #  by the reference equals the norm of the unsorted rows computed here.)
        w2wL1, inv1 = gram_inv_norm(v1)
        w2wL2, inv2 = gram_inv_norm(v2)

        # TODO(synk): row-wise sort has no clean Pallas/Mosaic lowering; plain JAX.
        w2wL1 = jnp.sort(w2wL1, axis=1)
        w2wL2 = jnp.sort(w2wL2, axis=1)

        # cross-lingual similarities = (D1 @ w2wL1) @ (D2 @ w2wL2).T with the
        # normalization AND the per-row argmax fused into the matmul epilogue.
        self.similarities, best = sim_with_argmax(w2wL1, w2wL2, inv1, inv2)

        # forward() is a pure host table lookup of the precomputed argmax.
        self._best_tgt = jax.device_get(best)

    def forward(self, src_token):
        if src_token not in self.stoi:
            return None
        src_idx = self.stoi[src_token]
        return self.itos_target[int(self._best_tgt[src_idx])]


# ---------------------------------------------------------------------------
# Demo / self-check
# ---------------------------------------------------------------------------
if __name__ == "__main__":
    VOCAB = 200   # intentionally NOT a multiple of 128/256 — exercises padding paths
    DIM = 48      # both languages share vocab size (the reference matmul requires it)

    key = jax.random.PRNGKey(0)
    k1, k2 = jax.random.split(key)
    vectors_source = jax.random.normal(k1, (VOCAB, DIM), dtype=jnp.float32)
    vectors_target = jax.random.normal(k2, (VOCAB, DIM), dtype=jnp.float32)

    stoi_source = {f"src_{i}": i for i in range(VOCAB)}
    itos_target = [f"tgt_{i}" for i in range(VOCAB)]

    model = UnsupervisedInitArtetxe(
        "L1", "L2", vectors_source, vectors_target, stoi_source, itos_target)
    jax.block_until_ready(model.similarities)

    # pure-JAX f32 reference
    def ref_similarities(v1, v2):
        w1 = jnp.sort(v1 @ v1.T, axis=1)
        w2 = jnp.sort(v2 @ v2.T, axis=1)
        w1 = w1 / jnp.linalg.norm(w1, axis=1, keepdims=True)
        w2 = w2 / jnp.linalg.norm(w2, axis=1, keepdims=True)
        return w1 @ w2.T

    sims_ref = ref_similarities(vectors_source, vectors_target)
    # bf16 MXU inputs with f32 accumulation -> relaxed tolerance vs the f32 reference
    assert jnp.allclose(model.similarities, sims_ref, rtol=3e-2, atol=3e-2), \
        "similarities mismatch vs reference"

    # fused argmax must agree exactly with jnp.argmax on the SAME similarities
    # matrix (first-max-index semantics), which is what forward() uses.
    best_ref = jnp.argmax(model.similarities, axis=1)
    assert jnp.array_equal(jnp.asarray(model._best_tgt), best_ref), "argmax mismatch"

    out_word = model.forward("src_3")
    assert out_word == itos_target[int(best_ref[3])], (out_word, int(best_ref[3]))
    assert model.forward("not_in_vocab") is None

    print("KERNEL_OK")
</pallas_src>

<mosaic_0001>
module attributes {stable_mosaic.version = 11 : i64} {
  func.func @_gram_inv_norm_kernel(%arg0: i32, %arg1: i32, %arg2: i32, %arg3: memref<200x128xbf16, #tpu.memory_space<vmem>>, %arg4: memref<256x128xbf16, #tpu.memory_space<vmem>>, %arg5: memref<200x256xf32, #tpu.memory_space<vmem>>, %arg6: memref<200x1xf32, #tpu.memory_space<vmem>>, %arg7: memref<200x256xf32, #tpu.memory_space<vmem>>, %arg8: memref<200x1xf32, #tpu.memory_space<vmem>>) attributes {dimension_semantics = [#tpu.dimension_semantics<parallel>, #tpu.dimension_semantics<arbitrary>, #tpu.dimension_semantics<arbitrary>], iteration_bounds = array<i64: 1, 1, 1>, scalar_prefetch = 0 : i64, scratch_operands = 2 : i64, tpu.core_type = #tpu.core_type<tc>, window_params = [{transform_indices = @transform_0, window_bounds = array<i64: 200, 128>}, {transform_indices = @transform_1, window_bounds = array<i64: 256, 128>}, {transform_indices = @transform_2, window_bounds = array<i64: 200, 256>}, {transform_indices = @transform_3, window_bounds = array<i64: 200, 1>}]} {
    %c0_i32 = arith.constant 0 : i32
    %0 = arith.cmpi eq, %arg2, %c0_i32 : i32
    %1 = arith.extui %0 : i1 to i32
    %c0_i32_0 = arith.constant 0 : i32
    %2 = arith.cmpi ne, %1, %c0_i32_0 : i32
    scf.if %2 {
      %cst_16 = arith.constant 0.000000e+00 : f32
      %22 = vector.broadcast %cst_16 : f32 to vector<200x256xf32>
      %c0_17 = arith.constant 0 : index
      %c0_18 = arith.constant 0 : index
      %23 = vector.load %arg7[%c0_17, %c0_18] : memref<200x256xf32, #tpu.memory_space<vmem>>, vector<200x256xf32>
      tpu.vector_store %arg7[%c0_17, %c0_18], %22 {strides = array<i32>} : memref<200x256xf32, #tpu.memory_space<vmem>>, vector<200x256xf32>,
    } else {
    }
    %c0_i32_1 = arith.constant 0 : i32
    %3 = arith.cmpi eq, %arg1, %c0_i32_1 : i32
    %c0_i32_2 = arith.constant 0 : i32
    %4 = arith.cmpi eq, %arg2, %c0_i32_2 : i32
    %5 = arith.andi %3, %4 : i1
    %6 = arith.extui %5 : i1 to i32
    %c0_i32_3 = arith.constant 0 : i32
    %7 = arith.cmpi ne, %6, %c0_i32_3 : i32
    scf.if %7 {
      %cst_16 = arith.constant 0.000000e+00 : f32
      %22 = vector.broadcast %cst_16 : f32 to vector<200x1xf32>
      %c0_17 = arith.constant 0 : index
      %c0_18 = arith.constant 0 : index
      %23 = vector.load %arg8[%c0_17, %c0_18] : memref<200x1xf32, #tpu.memory_space<vmem>>, vector<200x1xf32>
      tpu.vector_store %arg8[%c0_17, %c0_18], %22 {strides = array<i32>} : memref<200x1xf32, #tpu.memory_space<vmem>>, vector<200x1xf32>,
    } else {
    }
    %c0 = arith.constant 0 : index
    %c0_4 = arith.constant 0 : index
    %8 = vector.load %arg7[%c0, %c0_4] : memref<200x256xf32, #tpu.memory_space<vmem>>, vector<200x256xf32>
    %c0_5 = arith.constant 0 : index
    %c0_6 = arith.constant 0 : index
    %9 = vector.load %arg3[%c0_5, %c0_6] : memref<200x128xbf16, #tpu.memory_space<vmem>>, vector<200x128xbf16>
    %c0_7 = arith.constant 0 : index
    %c0_8 = arith.constant 0 : index
    %10 = vector.load %arg4[%c0_7, %c0_8] : memref<256x128xbf16, #tpu.memory_space<vmem>>, vector<256x128xbf16>
    %cst = arith.constant dense<0.000000e+00> : vector<200x256xf32>
    %11 = tpu.matmul %9, %10, %cst {dimension_numbers = #tpu.dot_dimension_numbers<[1], [1], [0], [0], [0, 0, 1, 0], [], []>} : vector<200x128xbf16>, vector<256x128xbf16>, vector<200x256xf32> -> vector<200x256xf32>
    %12 = arith.addf %8, %11 : vector<200x256xf32>
    %c0_9 = arith.constant 0 : index
    %c0_10 = arith.constant 0 : index
    %13 = vector.load %arg7[%c0_9, %c0_10] : memref<200x256xf32, #tpu.memory_space<vmem>>, vector<200x256xf32>
    tpu.vector_store %arg7[%c0_9, %c0_10], %12 {strides = array<i32>} : memref<200x256xf32, #tpu.memory_space<vmem>>, vector<200x256xf32>,
    %c0_i32_11 = arith.constant 0 : i32
    %14 = arith.cmpi eq, %arg2, %c0_i32_11 : i32
    %15 = arith.extui %14 : i1 to i32
    %c0_i32_12 = arith.constant 0 : i32
    %16 = arith.cmpi ne, %15, %c0_i32_12 : i32
    scf.if %16 {
      %c0_16 = arith.constant 0 : index
      %c0_17 = arith.constant 0 : index
      %22 = vector.load %arg7[%c0_16, %c0_17] : memref<200x256xf32, #tpu.memory_space<vmem>>, vector<200x256xf32>
      %c0_18 = arith.constant 0 : index
      %c0_19 = arith.constant 0 : index
      %23 = vector.load %arg5[%c0_18, %c0_19] : memref<200x256xf32, #tpu.memory_space<vmem>>, vector<200x256xf32>
      tpu.vector_store %arg5[%c0_18, %c0_19], %22 {strides = array<i32>} : memref<200x256xf32, #tpu.memory_space<vmem>>, vector<200x256xf32>,
      %c0_20 = arith.constant 0 : index
      %c0_21 = arith.constant 0 : index
      %24 = vector.load %arg8[%c0_20, %c0_21] : memref<200x1xf32, #tpu.memory_space<vmem>>, vector<200x1xf32>
      %25 = arith.mulf %22, %22 : vector<200x256xf32>
      %cst_22 = arith.constant dense<0.000000e+00> : vector<200xf32>
      %26 = vector.multi_reduction <add>, %25, %cst_22 [1] : vector<200x256xf32> to vector<200xf32>
      %27 = vector.shape_cast %26 : vector<200xf32> to vector<200x1xf32>
      %28 = arith.addf %24, %27 : vector<200x1xf32>
      %c0_23 = arith.constant 0 : index
      %c0_24 = arith.constant 0 : index
      %29 = vector.load %arg8[%c0_23, %c0_24] : memref<200x1xf32, #tpu.memory_space<vmem>>, vector<200x1xf32>
      tpu.vector_store %arg8[%c0_23, %c0_24], %28 {strides = array<i32>} : memref<200x1xf32, #tpu.memory_space<vmem>>, vector<200x1xf32>,
    } else {
    }
    %c0_i32_13 = arith.constant 0 : i32
    %17 = arith.cmpi eq, %arg2, %c0_i32_13 : i32
    %c0_i32_14 = arith.constant 0 : i32
    %18 = arith.cmpi eq, %arg1, %c0_i32_14 : i32
    %19 = arith.andi %17, %18 : i1
    %20 = arith.extui %19 : i1 to i32
    %c0_i32_15 = arith.constant 0 : i32
    %21 = arith.cmpi ne, %20, %c0_i32_15 : i32
    scf.if %21 {
      %c0_16 = arith.constant 0 : index
      %c0_17 = arith.constant 0 : index
      %22 = vector.load %arg8[%c0_16, %c0_17] : memref<200x1xf32, #tpu.memory_space<vmem>>, vector<200x1xf32>
      %cst_18 = arith.constant 9.99999996E-13 : f32
      %23 = vector.broadcast %cst_18 : f32 to vector<200x1xf32>
      %24 = arith.addf %22, %23 : vector<200x1xf32>
      %25 = math.rsqrt %24 : vector<200x1xf32>
      %c0_19 = arith.constant 0 : index
      %c0_20 = arith.constant 0 : index
      %26 = vector.load %arg6[%c0_19, %c0_20] : memref<200x1xf32, #tpu.memory_space<vmem>>, vector<200x1xf32>
      tpu.vector_store %arg6[%c0_19, %c0_20], %25 {strides = array<i32>} : memref<200x1xf32, #tpu.memory_space<vmem>>, vector<200x1xf32>,
    } else {
    }
    return
  }
  func.func @transform_0(%arg0: i32, %arg1: i32, %arg2: i32) -> (i32, i32) {
    %c0_i32 = arith.constant 0 : i32
    return %arg0, %arg2 : i32, i32
  }
  func.func @transform_1(%arg0: i32, %arg1: i32, %arg2: i32) -> (i32, i32) {
    %c0_i32 = arith.constant 0 : i32
    return %arg1, %arg2 : i32, i32
  }
  func.func @transform_2(%arg0: i32, %arg1: i32, %arg2: i32) -> (i32, i32) {
    %c0_i32 = arith.constant 0 : i32
    return %arg0, %arg1 : i32, i32
  }
  func.func @transform_3(%arg0: i32, %arg1: i32, %arg2: i32) -> (i32, i32) {
    %c0_i32 = arith.constant 0 : i32
    %c0_i32_0 = arith.constant 0 : i32
    return %arg0, %c0_i32 : i32, i32
  }
}

</mosaic_0001>

<llo_original>
// kernel: tpu_custom_call.1
$region0: #{tpu_custom_call.1}
  #allocation0 [shape = 'u32[]', space=smem, size = 0x4, offset = 0x4, fixed_abs, tag = 'smem constant byte address 0x4 - core index']
  #allocation1 [shape = 'u32[144,128]{1,0:T(1,128)}', space=vmem, size = 0x12000, scoped, tag = 'internal scratch']
  #allocation2 [shape = 'f32[200,256]{1,0:T(8,128)}', space=vmem, size = 0x32000, scoped, tag = 'scratch operand']
  #allocation3 [shape = 'f32[200,1]{1,0:T(8,128)}', space=vmem, size = 0x19000, scoped, tag = 'scratch operand']
  %s0 = inlined_call_operand.hbm [shape: bf16[200,128], index: 0, kind: input, shape index: {}]
  %s1 = inlined_call_operand.hbm [shape: bf16[256,128], index: 1, kind: input, shape index: {}]
  %s2 = inlined_call_operand.hbm [shape: f32[200,256], index: 2, kind: output, shape index: {0}]
  %s3 = inlined_call_operand.vmem [shape: f32[200,1], index: 3, kind: output, shape index: {1}]
  %4 = xla_tuple %s2, %s3
  %s5 = sld [smem:[#allocation0]]
  $region50: #{tpu_custom_call.1} parent=0
    _
  %s7 = ssub.s32 1, %s5
  %s8 = scalar_select 0, %s7, %s5
  $region1: #{tpu_custom_call.1} parent=0
    #allocation4 [shape = 'u8[51200]{0}', space=vmem, size = 0xc800, scoped, tag = 'input window, operand 0, single buffered']
    #allocation5 [shape = 's32[1]{0}', space=sflag, size = 0x4, scoped, tag = 'scoped memory for tpu_custom_call.1']
    #allocation6 [shape = 's32[1]{0}', space=sflag, size = 0x4, scoped, tag = 'scoped memory for tpu_custom_call.1']
    #allocation7 [shape = 'u8[65536]{0}', space=vmem, size = 0x10000, scoped, tag = 'input window, operand 1, single buffered']
    #allocation8 [shape = 's32[1]{0}', space=sflag, size = 0x4, scoped, tag = 'scoped memory for tpu_custom_call.1']
    #allocation9 [shape = 'u8[204800]{0}', space=vmem, size = 0x32000, scoped, tag = 'output window, operand 0, single buffered']
    %9 = vsyncpa [#allocation5], 0
    %10 = vsyncpa [#allocation8], 0
    %11 = vsyncpa [#allocation6], 0
    // Predicated region
    $region2: #{tpu_custom_call.1} parent=1 // pred_check
      _
    $region3: #{tpu_custom_call.1} parent=1 // pred_check_branch
      %13 = sbr.rel (0) target = $region5
    $region4: #{tpu_custom_call.1} parent=1 // pred_region
      %s15 = ssub.s32 1600, 1600
      %16 = vsyncadd [#allocation5], %s15
      %s17 = sshll.u32 [#allocation4], 4
      %s18 = int_to_ptr.vmem [resolvable:$true] %s17
      %23 = dma.hbm_to_vmem [thread:$0]  %s0, 1600, %s18, [#allocation5], 64, 64, 4
    $region5: #{tpu_custom_call.1} parent=1 // pred_fallthru
      _
    // Predicated region
    $region6: #{tpu_custom_call.1} parent=1 // pred_check
      _
    $region7: #{tpu_custom_call.1} parent=1 // pred_check_branch
      %25 = sbr.rel (0) target = $region9
    $region8: #{tpu_custom_call.1} parent=1 // pred_region
      %s27 = ssub.s32 2048, 2048
      %28 = vsyncadd [#allocation8], %s27
      %s29 = sshll.u32 [#allocation7], 4
      %s30 = int_to_ptr.vmem [resolvable:$true] %s29
      %35 = dma.hbm_to_vmem [thread:$0]  %s1, 2048, %s30, [#allocation8], 64, 64, 4
    $region9: #{tpu_custom_call.1} parent=1 // pred_fallthru
      _
    // Predicated region
    $region10: #{tpu_custom_call.1} parent=1 // pred_check
      _
    $region11: #{tpu_custom_call.1} parent=1 // pred_check_branch
      %37 = sbr.rel (0) target = $region13
    $region12: #{tpu_custom_call.1} parent=1 // pred_region
      %38 = dma.done [#allocation5], 1600
    $region13: #{tpu_custom_call.1} parent=1 // pred_fallthru
      _
    // Predicated region
    $region14: #{tpu_custom_call.1} parent=1 // pred_check
      _
    $region15: #{tpu_custom_call.1} parent=1 // pred_check_branch
      %40 = sbr.rel (0) target = $region17
    $region16: #{tpu_custom_call.1} parent=1 // pred_region
      %41 = dma.done [#allocation8], 2048
    $region17: #{tpu_custom_call.1} parent=1 // pred_fallthru
      _
    %p43 = scmp.eq.s32.totalorder 0, 0
    // Predicated region
    $region18: #{tpu_custom_call.1} parent=1 // pred_check
      %p44 = pneg %p43
    $region19: #{tpu_custom_call.1} parent=1 // pred_check_branch
      %46 = sbr.rel (%p44) target = $region21
    $region20: #{tpu_custom_call.1} parent=1 // pred_region
      %47 = vst [vmem:[#allocation2] sm:$0xff] 0.0
      %48 = vst [vmem:[#allocation2 + $0x8] sm:$0xff] 0.0
      %49 = vst [vmem:[#allocation2 + $0x10] sm:$0xff] 0.0
      %50 = vst [vmem:[#allocation2 + $0x18] sm:$0xff] 0.0
      %51 = vst [vmem:[#allocation2 + $0x20] sm:$0xff] 0.0
      %52 = vst [vmem:[#allocation2 + $0x28] sm:$0xff] 0.0
      %53 = vst [vmem:[#allocation2 + $0x30] sm:$0xff] 0.0
      %54 = vst [vmem:[#allocation2 + $0x38] sm:$0xff] 0.0
      %55 = vst [vmem:[#allocation2 + $0x40] sm:$0xff] 0.0
      %56 = vst [vmem:[#allocation2 + $0x48] sm:$0xff] 0.0
      %57 = vst [vmem:[#allocation2 + $0x50] sm:$0xff] 0.0
      %58 = vst [vmem:[#allocation2 + $0x58] sm:$0xff] 0.0
      %59 = vst [vmem:[#allocation2 + $0x60] sm:$0xff] 0.0
      %60 = vst [vmem:[#allocation2 + $0x68] sm:$0xff] 0.0
      %61 = vst [vmem:[#allocation2 + $0x70] sm:$0xff] 0.0
      %62 = vst [vmem:[#allocation2 + $0x78] sm:$0xff] 0.0
      %63 = vst [vmem:[#allocation2 + $0x80] sm:$0xff] 0.0
      %64 = vst [vmem:[#allocation2 + $0x88] sm:$0xff] 0.0
      %65 = vst [vmem:[#allocation2 + $0x90] sm:$0xff] 0.0
      %66 = vst [vmem:[#allocation2 + $0x98] sm:$0xff] 0.0
      %67 = vst [vmem:[#allocation2 + $0xa0] sm:$0xff] 0.0
      %68 = vst [vmem:[#allocation2 + $0xa8] sm:$0xff] 0.0
      %69 = vst [vmem:[#allocation2 + $0xb0] sm:$0xff] 0.0
      %70 = vst [vmem:[#allocation2 + $0xb8] sm:$0xff] 0.0
      %71 = vst [vmem:[#allocation2 + $0xc0] sm:$0xff] 0.0
      %72 = vst [vmem:[#allocation2 + $0xc8] sm:$0xff] 0.0
      %73 = vst [vmem:[#allocation2 + $0xd0] sm:$0xff] 0.0
      %74 = vst [vmem:[#allocation2 + $0xd8] sm:$0xff] 0.0
      %75 = vst [vmem:[#allocation2 + $0xe0] sm:$0xff] 0.0
      %76 = vst [vmem:[#allocation2 + $0xe8] sm:$0xff] 0.0
      %77 = vst [vmem:[#allocation2 + $0xf0] sm:$0xff] 0.0
      %78 = vst [vmem:[#allocation2 + $0xf8] sm:$0xff] 0.0
      %79 = vst [vmem:[#allocation2 + $0x100] sm:$0xff] 0.0
      %80 = vst [vmem:[#allocation2 + $0x108] sm:$0xff] 0.0
      %81 = vst [vmem:[#allocation2 + $0x110] sm:$0xff] 0.0
      %82 = vst [vmem:[#allocation2 + $0x118] sm:$0xff] 0.0
      %83 = vst [vmem:[#allocation2 + $0x120] sm:$0xff] 0.0
      %84 = vst [vmem:[#allocation2 + $0x128] sm:$0xff] 0.0
      %85 = vst [vmem:[#allocation2 + $0x130] sm:$0xff] 0.0
      %86 = vst [vmem:[#allocation2 + $0x138] sm:$0xff] 0.0
      %87 = vst [vmem:[#allocation2 + $0x140] sm:$0xff] 0.0
      %88 = vst [vmem:[#allocation2 + $0x148] sm:$0xff] 0.0
      %89 = vst [vmem:[#allocation2 + $0x150] sm:$0xff] 0.0
      %90 = vst [vmem:[#allocation2 + $0x158] sm:$0xff] 0.0
      %91 = vst [vmem:[#allocation2 + $0x160] sm:$0xff] 0.0
      %92 = vst [vmem:[#allocation2 + $0x168] sm:$0xff] 0.0
      %93 = vst [vmem:[#allocation2 + $0x170] sm:$0xff] 0.0
      %94 = vst [vmem:[#allocation2 + $0x178] sm:$0xff] 0.0
      %95 = vst [vmem:[#allocation2 + $0x180] sm:$0xff] 0.0
      %96 = vst [vmem:[#allocation2 + $0x188] sm:$0xff] 0.0
    $region21: #{tpu_custom_call.1} parent=1 // pred_fallthru
      _
    %p97 = scmp.eq.s32.totalorder 0, 0
    %p98 = pnand %p97, %p43
    %p99 = pneg %p98
    // Predicated region
    $region22: #{tpu_custom_call.1} parent=1 // pred_check
      _
    $region23: #{tpu_custom_call.1} parent=1 // pred_check_branch
      %101 = sbr.rel (%p98) target = $region25
    $region24: #{tpu_custom_call.1} parent=1 // pred_region
      %vm102 = vcmask 7168
      %103 = vst.msk [vmem:[#allocation3] sm:$0xff] %vm102, 0.0
      %104 = vst.msk [vmem:[#allocation3 + $0x8] sm:$0xff] %vm102, 0.0
      %105 = vst.msk [vmem:[#allocation3 + $0x10] sm:$0xff] %vm102, 0.0
      %106 = vst.msk [vmem:[#allocation3 + $0x18] sm:$0xff] %vm102, 0.0
      %107 = vst.msk [vmem:[#allocation3 + $0x20] sm:$0xff] %vm102, 0.0
      %108 = vst.msk [vmem:[#allocation3 + $0x28] sm:$0xff] %vm102, 0.0
      %109 = vst.msk [vmem:[#allocation3 + $0x30] sm:$0xff] %vm102, 0.0
      %110 = vst.msk [vmem:[#allocation3 + $0x38] sm:$0xff] %vm102, 0.0
      %111 = vst.msk [vmem:[#allocation3 + $0x40] sm:$0xff] %vm102, 0.0
      %112 = vst.msk [vmem:[#allocation3 + $0x48] sm:$0xff] %vm102, 0.0
      %113 = vst.msk [vmem:[#allocation3 + $0x50] sm:$0xff] %vm102, 0.0
      %114 = vst.msk [vmem:[#allocation3 + $0x58] sm:$0xff] %vm102, 0.0
      %115 = vst.msk [vmem:[#allocation3 + $0x60] sm:$0xff] %vm102, 0.0
      %116 = vst.msk [vmem:[#allocation3 + $0x68] sm:$0xff] %vm102, 0.0
      %117 = vst.msk [vmem:[#allocation3 + $0x70] sm:$0xff] %vm102, 0.0
      %118 = vst.msk [vmem:[#allocation3 + $0x78] sm:$0xff] %vm102, 0.0
      %119 = vst.msk [vmem:[#allocation3 + $0x80] sm:$0xff] %vm102, 0.0
      %120 = vst.msk [vmem:[#allocation3 + $0x88] sm:$0xff] %vm102, 0.0
      %121 = vst.msk [vmem:[#allocation3 + $0x90] sm:$0xff] %vm102, 0.0
      %122 = vst.msk [vmem:[#allocation3 + $0x98] sm:$0xff] %vm102, 0.0
      %123 = vst.msk [vmem:[#allocation3 + $0xa0] sm:$0xff] %vm102, 0.0
      %124 = vst.msk [vmem:[#allocation3 + $0xa8] sm:$0xff] %vm102, 0.0
      %125 = vst.msk [vmem:[#allocation3 + $0xb0] sm:$0xff] %vm102, 0.0
      %126 = vst.msk [vmem:[#allocation3 + $0xb8] sm:$0xff] %vm102, 0.0
      %127 = vst.msk [vmem:[#allocation3 + $0xc0] sm:$0xff] %vm102, 0.0
    $region25: #{tpu_custom_call.1} parent=1 // pred_fallthru
      _
    %v128 = vld [vmem:[#allocation2] sm:$0xff]
    %v129 = vld [vmem:[#allocation2 + $0x8] sm:$0xff]
    %v130 = vld [vmem:[#allocation2 + $0x10] sm:$0xff]
    %v131 = vld [vmem:[#allocation2 + $0x18] sm:$0xff]
    %v132 = vld [vmem:[#allocation2 + $0x20] sm:$0xff]
    %v133 = vld [vmem:[#allocation2 + $0x28] sm:$0xff]
    %v134 = vld [vmem:[#allocation2 + $0x30] sm:$0xff]
    %v135 = vld [vmem:[#allocation2 + $0x38] sm:$0xff]
    %v136 = vld [vmem:[#allocation2 + $0x40] sm:$0xff]
    %v137 = vld [vmem:[#allocation2 + $0x48] sm:$0xff]
    %v138 = vld [vmem:[#allocation2 + $0x50] sm:$0xff]
    %v139 = vld [vmem:[#allocation2 + $0x58] sm:$0xff]
    %v140 = vld [vmem:[#allocation2 + $0x60] sm:$0xff]
    %v141 = vld [vmem:[#allocation2 + $0x68] sm:$0xff]
    %v142 = vld [vmem:[#allocation2 + $0x70] sm:$0xff]
    %v143 = vld [vmem:[#allocation2 + $0x78] sm:$0xff]
    %v144 = vld [vmem:[#allocation2 + $0x80] sm:$0xff]
    %v145 = vld [vmem:[#allocation2 + $0x88] sm:$0xff]
    %v146 = vld [vmem:[#allocation2 + $0x90] sm:$0xff]
    %v147 = vld [vmem:[#allocation2 + $0x98] sm:$0xff]
    %v148 = vld [vmem:[#allocation2 + $0xa0] sm:$0xff]
    %v149 = vld [vmem:[#allocation2 + $0xa8] sm:$0xff]
    %v150 = vld [vmem:[#allocation2 + $0xb0] sm:$0xff]
    %v151 = vld [vmem:[#allocation2 + $0xb8] sm:$0xff]
    %v152 = vld [vmem:[#allocation2 + $0xc0] sm:$0xff]
    %v153 = vld [vmem:[#allocation2 + $0xc8] sm:$0xff]
    %v154 = vld [vmem:[#allocation2 + $0xd0] sm:$0xff]
    %v155 = vld [vmem:[#allocation2 + $0xd8] sm:$0xff]
    %v156 = vld [vmem:[#allocation2 + $0xe0] sm:$0xff]
    %v157 = vld [vmem:[#allocation2 + $0xe8] sm:$0xff]
    %v158 = vld [vmem:[#allocation2 + $0xf0] sm:$0xff]
    %v159 = vld [vmem:[#allocation2 + $0xf8] sm:$0xff]
    %v160 = vld [vmem:[#allocation2 + $0x100] sm:$0xff]
    %v161 = vld [vmem:[#allocation2 + $0x108] sm:$0xff]
    %v162 = vld [vmem:[#allocation2 + $0x110] sm:$0xff]
    %v163 = vld [vmem:[#allocation2 + $0x118] sm:$0xff]
    %v164 = vld [vmem:[#allocation2 + $0x120] sm:$0xff]
    %v165 = vld [vmem:[#allocation2 + $0x128] sm:$0xff]
    %v166 = vld [vmem:[#allocation2 + $0x130] sm:$0xff]
    %v167 = vld [vmem:[#allocation2 + $0x138] sm:$0xff]
    %v168 = vld [vmem:[#allocation2 + $0x140] sm:$0xff]
    %v169 = vld [vmem:[#allocation2 + $0x148] sm:$0xff]
    %v170 = vld [vmem:[#allocation2 + $0x150] sm:$0xff]
    %v171 = vld [vmem:[#allocation2 + $0x158] sm:$0xff]
    %v172 = vld [vmem:[#allocation2 + $0x160] sm:$0xff]
    %v173 = vld [vmem:[#allocation2 + $0x168] sm:$0xff]
    %v174 = vld [vmem:[#allocation2 + $0x170] sm:$0xff]
    %v175 = vld [vmem:[#allocation2 + $0x178] sm:$0xff]
    %v176 = vld [vmem:[#allocation2 + $0x180] sm:$0xff]
    %v177 = vld [vmem:[#allocation2 + $0x188] sm:$0xff]
    %v178 = vld [vmem:[#allocation4] sm:$0xf]
    %v179 = vld [vmem:[#allocation4 + $0x4] sm:$0xf]
    %v180 = vld [vmem:[#allocation4 + $0x8] sm:$0xf]
    %v181 = vld [vmem:[#allocation4 + $0xc] sm:$0xf]
    %v182 = vld [vmem:[#allocation4 + $0x10] sm:$0xf]
    %v183 = vld [vmem:[#allocation4 + $0x14] sm:$0xf]
    %v184 = vld [vmem:[#allocation4 + $0x18] sm:$0xf]
    %v185 = vld [vmem:[#allocation4 + $0x1c] sm:$0xf]
    %v186 = vld [vmem:[#allocation4 + $0x20] sm:$0xf]
    %v187 = vld [vmem:[#allocation4 + $0x24] sm:$0xf]
    %v188 = vld [vmem:[#allocation4 + $0x28] sm:$0xf]
    %v189 = vld [vmem:[#allocation4 + $0x2c] sm:$0xf]
    %v190 = vld [vmem:[#allocation4 + $0x30] sm:$0xf]
    %v191 = vld [vmem:[#allocation4 + $0x34] sm:$0xf]
    %v192 = vld [vmem:[#allocation4 + $0x38] sm:$0xf]
    %v193 = vld [vmem:[#allocation4 + $0x3c] sm:$0xf]
    %v194 = vld [vmem:[#allocation4 + $0x40] sm:$0xf]
    %v195 = vld [vmem:[#allocation4 + $0x44] sm:$0xf]
    %v196 = vld [vmem:[#allocation4 + $0x48] sm:$0xf]
    %v197 = vld [vmem:[#allocation4 + $0x4c] sm:$0xf]
    %v198 = vld [vmem:[#allocation4 + $0x50] sm:$0xf]
    %v199 = vld [vmem:[#allocation4 + $0x54] sm:$0xf]
    %v200 = vld [vmem:[#allocation4 + $0x58] sm:$0xf]
    %v201 = vld [vmem:[#allocation4 + $0x5c] sm:$0xf]
    %v202 = vld [vmem:[#allocation4 + $0x60] sm:$0xf]
    %v203 = vld [vmem:[#allocation7] sm:$0xf]
    %v204 = vld [vmem:[#allocation7 + $0x4] sm:$0xf]
    %v205 = vld [vmem:[#allocation7 + $0x8] sm:$0xf]
    %v206 = vld [vmem:[#allocation7 + $0xc] sm:$0xf]
    %v207 = vld [vmem:[#allocation7 + $0x10] sm:$0xf]
    %v208 = vld [vmem:[#allocation7 + $0x14] sm:$0xf]
    %v209 = vld [vmem:[#allocation7 + $0x18] sm:$0xf]
    %v210 = vld [vmem:[#allocation7 + $0x1c] sm:$0xf]
    %v211 = vld [vmem:[#allocation7 + $0x20] sm:$0xf]
    %v212 = vld [vmem:[#allocation7 + $0x24] sm:$0xf]
    %v213 = vld [vmem:[#allocation7 + $0x28] sm:$0xf]
    %v214 = vld [vmem:[#allocation7 + $0x2c] sm:$0xf]
    %v215 = vld [vmem:[#allocation7 + $0x30] sm:$0xf]
    %v216 = vld [vmem:[#allocation7 + $0x34] sm:$0xf]
    %v217 = vld [vmem:[#allocation7 + $0x38] sm:$0xf]
    %v218 = vld [vmem:[#allocation7 + $0x3c] sm:$0xf]
    %v219 = vld [vmem:[#allocation7 + $0x40] sm:$0xf]
    %v220 = vld [vmem:[#allocation7 + $0x44] sm:$0xf]
    %v221 = vld [vmem:[#allocation7 + $0x48] sm:$0xf]
    %v222 = vld [vmem:[#allocation7 + $0x4c] sm:$0xf]
    %v223 = vld [vmem:[#allocation7 + $0x50] sm:$0xf]
    %v224 = vld [vmem:[#allocation7 + $0x54] sm:$0xf]
    %v225 = vld [vmem:[#allocation7 + $0x58] sm:$0xf]
    %v226 = vld [vmem:[#allocation7 + $0x5c] sm:$0xf]
    %v227 = vld [vmem:[#allocation7 + $0x60] sm:$0xf]
    %v228 = vld [vmem:[#allocation7 + $0x64] sm:$0xf]
    %v229 = vld [vmem:[#allocation7 + $0x68] sm:$0xf]
    %v230 = vld [vmem:[#allocation7 + $0x6c] sm:$0xf]
    %v231 = vld [vmem:[#allocation7 + $0x70] sm:$0xf]
    %v232 = vld [vmem:[#allocation7 + $0x74] sm:$0xf]
    %v233 = vld [vmem:[#allocation7 + $0x78] sm:$0xf]
    %v234 = vld [vmem:[#allocation7 + $0x7c] sm:$0xf]
    %v260 = vunpack.c.l.b16 %v178
    %v261 = vunpack.c.l.b16 %v179
    %v262 = vunpack.c.l.b16 %v180
    %v263 = vunpack.c.l.b16 %v181
    %v264 = vunpack.c.l.b16 %v182
    %v265 = vunpack.c.l.b16 %v183
    %v266 = vunpack.c.l.b16 %v184
    %v267 = vunpack.c.l.b16 %v185
    %v268 = vunpack.c.l.b16 %v186
    %v269 = vunpack.c.l.b16 %v187
    %v270 = vunpack.c.l.b16 %v188
    %v271 = vunpack.c.l.b16 %v189
    %v272 = vunpack.c.l.b16 %v190
    %v273 = vunpack.c.l.b16 %v191
    %v274 = vunpack.c.l.b16 %v192
    %v275 = vunpack.c.l.b16 %v193
    %v276 = vunpack.c.l.b16 %v194
    %v277 = vunpack.c.l.b16 %v195
    %v278 = vunpack.c.l.b16 %v196
    %v279 = vunpack.c.l.b16 %v197
    %v280 = vunpack.c.l.b16 %v198
    %v281 = vunpack.c.l.b16 %v199
    %v282 = vunpack.c.l.b16 %v200
    %v283 = vunpack.c.l.b16 %v201
    %v284 = vunpack.c.l.b16 %v202
    %v285 = vpack.c.b16 %v261, %v260
    %v286 = vpack.c.b16 %v263, %v262
    %v287 = vpack.c.b16 %v265, %v264
    %v288 = vpack.c.b16 %v267, %v266
    %v289 = vpack.c.b16 %v269, %v268
    %v290 = vpack.c.b16 %v271, %v270
    %v291 = vpack.c.b16 %v273, %v272
    %v292 = vpack.c.b16 %v275, %v274
    %v293 = vpack.c.b16 %v277, %v276
    %v294 = vpack.c.b16 %v279, %v278
    %v295 = vpack.c.b16 %v281, %v280
    %v296 = vpack.c.b16 %v283, %v282
    %v297 = vpack.c.b16 %v284, %v284
    %v343 = vunpack.c.l.b16 %v203
    %v344 = vunpack.c.l.b16 %v204
    %v345 = vunpack.c.l.b16 %v205
    %v346 = vunpack.c.l.b16 %v206
    %v347 = vunpack.c.l.b16 %v207
    %v348 = vunpack.c.l.b16 %v208
    %v349 = vunpack.c.l.b16 %v209
    %v350 = vunpack.c.l.b16 %v210
    %v351 = vunpack.c.l.b16 %v211
    %v352 = vunpack.c.l.b16 %v212
    %v353 = vunpack.c.l.b16 %v213
    %v354 = vunpack.c.l.b16 %v214
    %v355 = vunpack.c.l.b16 %v215
    %v356 = vunpack.c.l.b16 %v216
    %v357 = vunpack.c.l.b16 %v217
    %v358 = vunpack.c.l.b16 %v218
    %v359 = vunpack.c.l.b16 %v219
    %v360 = vunpack.c.l.b16 %v220
    %v361 = vunpack.c.l.b16 %v221
    %v362 = vunpack.c.l.b16 %v222
    %v363 = vunpack.c.l.b16 %v223
    %v364 = vunpack.c.l.b16 %v224
    %v365 = vunpack.c.l.b16 %v225
    %v366 = vunpack.c.l.b16 %v226
    %v367 = vunpack.c.l.b16 %v227
    %v368 = vunpack.c.l.b16 %v228
    %v369 = vunpack.c.l.b16 %v229
    %v370 = vunpack.c.l.b16 %v230
    %v371 = vunpack.c.l.b16 %v231
    %v372 = vunpack.c.l.b16 %v232
    %v373 = vunpack.c.l.b16 %v233
    %v374 = vunpack.c.l.b16 %v234
    %v375 = vpack.c.b16 %v344, %v343
    %v376 = vpack.c.b16 %v346, %v345
    %v377 = vpack.c.b16 %v348, %v347
    %v378 = vpack.c.b16 %v350, %v349
    %v379 = vpack.c.b16 %v352, %v351
    %v380 = vpack.c.b16 %v354, %v353
    %v381 = vpack.c.b16 %v356, %v355
    %v382 = vpack.c.b16 %v358, %v357
    %v383 = vpack.c.b16 %v360, %v359
    %v384 = vpack.c.b16 %v362, %v361
    %v385 = vpack.c.b16 %v364, %v363
    %v386 = vpack.c.b16 %v366, %v365
    %v387 = vpack.c.b16 %v368, %v367
    %v388 = vpack.c.b16 %v370, %v369
    %v389 = vpack.c.b16 %v372, %v371
    %v390 = vpack.c.b16 %v374, %v373
    %407 = vmatprep.subr.bf16.mxu0 0
    %408 = vmatpush1.bf16.xpose.msra.mxu0 %v375
    %409 = vmatprep.subr.bf16.mxu0 0
    %410 = vmatpush1.bf16.xpose.msra.mxu0 %v376
    %411 = vmatprep.subr.bf16.mxu0 0
    %412 = vmatpush1.bf16.xpose.msra.mxu0 %v377
    %413 = vmatprep.subr.bf16.mxu0 0
    %414 = vmatpush1.bf16.xpose.msra.mxu0 %v378
    %415 = vmatprep.subr.bf16.mxu0 0
    %416 = vmatpush1.bf16.xpose.msra.mxu0 %v379
    %417 = vmatprep.subr.bf16.mxu0 0
    %418 = vmatpush1.bf16.xpose.msra.mxu0 %v380
    %419 = vmatprep.subr.bf16.mxu0 0
    %420 = vmatpush1.bf16.xpose.msra.mxu0 %v381
    %421 = vmatprep.subr.bf16.mxu0 0
    %422 = vmatpush1.bf16.xpose.msra.mxu0 %v382
    %423 = vmatprep.subr.bf16.mxu0 0
    %424 = vmatpush1.bf16.xpose.msra.mxu0 %v383
    %425 = vmatprep.subr.bf16.mxu0 0
    %426 = vmatpush1.bf16.xpose.msra.mxu0 %v384
    %427 = vmatprep.subr.bf16.mxu0 0
    %428 = vmatpush1.bf16.xpose.msra.mxu0 %v385
    %429 = vmatprep.subr.bf16.mxu0 0
    %430 = vmatpush1.bf16.xpose.msra.mxu0 %v386
    %431 = vmatprep.subr.bf16.mxu0 0
    %432 = vmatpush1.bf16.xpose.msra.mxu0 %v387
    %433 = vmatprep.subr.bf16.mxu0 0
    %434 = vmatpush1.bf16.xpose.msra.mxu0 %v388
    %435 = vmatprep.subr.bf16.mxu0 0
    %436 = vmatpush1.bf16.xpose.msra.mxu0 %v389
    %437 = vmatprep.subr.bf16.mxu0 0
    %438 = vmatpush1.bf16.xpose.msra.mxu0 %v390
    %439 = vmatprep.mubr.bf16.mxu0 0
    %440 = vmatmul.mubr.bf16.gmra.mrb[0].mxu0 %v285
    %v441 = vpop.f32.mrb[0].mxu0
    %v442 = vadd.f32 0.0, %v441
    %v443 = vpop.f32.mrb[0].mxu0
    %v444 = vadd.f32 0.0, %v443
    %v445 = vpop.f32.mrb[0].mxu0
    %v446 = vadd.f32 0.0, %v445
    %v447 = vpop.f32.mrb[0].mxu0
    %v448 = vadd.f32 0.0, %v447
    %449 = vmatprep.mubr.bf16.mxu0 0
    %450 = vmatmul.mubr.bf16.gmra.mrb[0].mxu0 %v286
    %v451 = vpop.f32.mrb[0].mxu0
    %v452 = vadd.f32 0.0, %v451
    %v453 = vpop.f32.mrb[0].mxu0
    %v454 = vadd.f32 0.0, %v453
    %v455 = vpop.f32.mrb[0].mxu0
    %v456 = vadd.f32 0.0, %v455
    %v457 = vpop.f32.mrb[0].mxu0
    %v458 = vadd.f32 0.0, %v457
    %459 = vmatprep.mubr.bf16.mxu0 0
    %460 = vmatmul.mubr.bf16.gmra.mrb[0].mxu0 %v287
    %v461 = vpop.f32.mrb[0].mxu0
    %v462 = vadd.f32 0.0, %v461
    %v463 = vpop.f32.mrb[0].mxu0
    %v464 = vadd.f32 0.0, %v463
    %v465 = vpop.f32.mrb[0].mxu0
    %v466 = vadd.f32 0.0, %v465
    %v467 = vpop.f32.mrb[0].mxu0
    %v468 = vadd.f32 0.0, %v467
    %469 = vmatprep.mubr.bf16.mxu0 0
    %470 = vmatmul.mubr.bf16.gmra.mrb[0].mxu0 %v288
    %v471 = vpop.f32.mrb[0].mxu0
    %v472 = vadd.f32 0.0, %v471
    %v473 = vpop.f32.mrb[0].mxu0
    %v474 = vadd.f32 0.0, %v473
    %v475 = vpop.f32.mrb[0].mxu0
    %v476 = vadd.f32 0.0, %v475
    %v477 = vpop.f32.mrb[0].mxu0
    %v478 = vadd.f32 0.0, %v477
    %479 = vmatprep.mubr.bf16.mxu0 0
    %480 = vmatmul.mubr.bf16.gmra.mrb[0].mxu0 %v289
    %v481 = vpop.f32.mrb[0].mxu0
    %v482 = vadd.f32 0.0, %v481
    %v483 = vpop.f32.mrb[0].mxu0
    %v484 = vadd.f32 0.0, %v483
    %v485 = vpop.f32.mrb[0].mxu0
    %v486 = vadd.f32 0.0, %v485
    %v487 = vpop.f32.mrb[0].mxu0
    %v488 = vadd.f32 0.0, %v487
    %489 = vmatprep.mubr.bf16.mxu0 0
    %490 = vmatmul.mubr.bf16.gmra.mrb[0].mxu0 %v290
    %v491 = vpop.f32.mrb[0].mxu0
    %v492 = vadd.f32 0.0, %v491
    %v493 = vpop.f32.mrb[0].mxu0
    %v494 = vadd.f32 0.0, %v493
    %v495 = vpop.f32.mrb[0].mxu0
    %v496 = vadd.f32 0.0, %v495
    %v497 = vpop.f32.mrb[0].mxu0
    %v498 = vadd.f32 0.0, %v497
    %499 = vmatprep.mubr.bf16.mxu0 0
    %500 = vmatmul.mubr.bf16.gmra.mrb[0].mxu0 %v291
    %v501 = vpop.f32.mrb[0].mxu0
    %v502 = vadd.f32 0.0, %v501
    %v503 = vpop.f32.mrb[0].mxu0
    %v504 = vadd.f32 0.0, %v503
    %v505 = vpop.f32.mrb[0].mxu0
    %v506 = vadd.f32 0.0, %v505
    %v507 = vpop.f32.mrb[0].mxu0
    %v508 = vadd.f32 0.0, %v507
    %509 = vmatprep.mubr.bf16.mxu0 0
    %510 = vmatmul.mubr.bf16.gmra.mrb[0].mxu0 %v292
    %v511 = vpop.f32.mrb[0].mxu0
    %v512 = vadd.f32 0.0, %v511
    %v513 = vpop.f32.mrb[0].mxu0
    %v514 = vadd.f32 0.0, %v513
    %v515 = vpop.f32.mrb[0].mxu0
    %v516 = vadd.f32 0.0, %v515
    %v517 = vpop.f32.mrb[0].mxu0
    %v518 = vadd.f32 0.0, %v517
    %519 = vmatprep.mubr.bf16.mxu0 0
    %520 = vmatmul.mubr.bf16.gmra.mrb[0].mxu0 %v293
    %v521 = vpop.f32.mrb[0].mxu0
    %v522 = vadd.f32 0.0, %v521
    %v523 = vpop.f32.mrb[0].mxu0
    %v524 = vadd.f32 0.0, %v523
    %v525 = vpop.f32.mrb[0].mxu0
    %v526 = vadd.f32 0.0, %v525
    %v527 = vpop.f32.mrb[0].mxu0
    %v528 = vadd.f32 0.0, %v527
    %529 = vmatprep.mubr.bf16.mxu0 0
    %530 = vmatmul.mubr.bf16.gmra.mrb[0].mxu0 %v294
    %v531 = vpop.f32.mrb[0].mxu0
    %v532 = vadd.f32 0.0, %v531
    %v533 = vpop.f32.mrb[0].mxu0
    %v534 = vadd.f32 0.0, %v533
    %v535 = vpop.f32.mrb[0].mxu0
    %v536 = vadd.f32 0.0, %v535
    %v537 = vpop.f32.mrb[0].mxu0
    %v538 = vadd.f32 0.0, %v537
    %539 = vmatprep.mubr.bf16.mxu0 0
    %540 = vmatmul.mubr.bf16.gmra.mrb[0].mxu0 %v295
    %v541 = vpop.f32.mrb[0].mxu0
    %v542 = vadd.f32 0.0, %v541
    %v543 = vpop.f32.mrb[0].mxu0
    %v544 = vadd.f32 0.0, %v543
    %v545 = vpop.f32.mrb[0].mxu0
    %v546 = vadd.f32 0.0, %v545
    %v547 = vpop.f32.mrb[0].mxu0
    %v548 = vadd.f32 0.0, %v547
    %549 = vmatprep.mubr.bf16.mxu0 0
    %550 = vmatmul.mubr.bf16.gmra.mrb[0].mxu0 %v296
    %v551 = vpop.f32.mrb[0].mxu0
    %v552 = vadd.f32 0.0, %v551
    %v553 = vpop.f32.mrb[0].mxu0
    %v554 = vadd.f32 0.0, %v553
    %v555 = vpop.f32.mrb[0].mxu0
    %v556 = vadd.f32 0.0, %v555
    %v557 = vpop.f32.mrb[0].mxu0
    %v558 = vadd.f32 0.0, %v557
    %559 = vmatprep.mubr.bf16.mxu0 0
    %560 = vmatmul.mubr.bf16.gmra.mrb[0].mxu0 %v297
    %v561 = vpop.f32.mrb[0].mxu0
    %v562 = vadd.f32 0.0, %v561
    %v563 = vpop.f32.mrb[0].mxu0
    %v564 = vadd.f32 0.0, %v563
    %v565 = vpop.f32.mrb[0].mxu0
    %v566 = vpop.f32.mrb[0].mxu0
    %567 = vdwg.mxu0
    %v568 = vadd.f32 %v128, %v442
    %v569 = vadd.f32 %v129, %v444
    %v570 = vadd.f32 %v130, %v446
    %v571 = vadd.f32 %v131, %v448
    %v572 = vadd.f32 %v132, %v452
    %v573 = vadd.f32 %v133, %v454
    %v574 = vadd.f32 %v134, %v456
    %v575 = vadd.f32 %v135, %v458
    %v576 = vadd.f32 %v136, %v462
    %v577 = vadd.f32 %v137, %v464
    %v578 = vadd.f32 %v138, %v466
    %v579 = vadd.f32 %v139, %v468
    %v580 = vadd.f32 %v140, %v472
    %v581 = vadd.f32 %v141, %v474
    %v582 = vadd.f32 %v142, %v476
    %v583 = vadd.f32 %v143, %v478
    %v584 = vadd.f32 %v144, %v482
    %v585 = vadd.f32 %v145, %v484
    %v586 = vadd.f32 %v146, %v486
    %v587 = vadd.f32 %v147, %v488
    %v588 = vadd.f32 %v148, %v492
    %v589 = vadd.f32 %v149, %v494
    %v590 = vadd.f32 %v150, %v496
    %v591 = vadd.f32 %v151, %v498
    %v592 = vadd.f32 %v152, %v502
    %v593 = vadd.f32 %v153, %v504
    %v594 = vadd.f32 %v154, %v506
    %v595 = vadd.f32 %v155, %v508
    %v596 = vadd.f32 %v156, %v512
    %v597 = vadd.f32 %v157, %v514
    %v598 = vadd.f32 %v158, %v516
    %v599 = vadd.f32 %v159, %v518
    %v600 = vadd.f32 %v160, %v522
    %v601 = vadd.f32 %v161, %v524
    %v602 = vadd.f32 %v162, %v526
    %v603 = vadd.f32 %v163, %v528
    %v604 = vadd.f32 %v164, %v532
    %v605 = vadd.f32 %v165, %v534
    %v606 = vadd.f32 %v166, %v536
    %v607 = vadd.f32 %v167, %v538
    %v608 = vadd.f32 %v168, %v542
    %v609 = vadd.f32 %v169, %v544
    %v610 = vadd.f32 %v170, %v546
    %v611 = vadd.f32 %v171, %v548
    %v612 = vadd.f32 %v172, %v552
    %v613 = vadd.f32 %v173, %v554
    %v614 = vadd.f32 %v174, %v556
    %v615 = vadd.f32 %v175, %v558
    %v616 = vadd.f32 %v176, %v562
    %v617 = vadd.f32 %v177, %v564
    %618 = vst [vmem:[#allocation2] sm:$0xff] %v568
    %619 = vst [vmem:[#allocation2 + $0x8] sm:$0xff] %v569
    %620 = vst [vmem:[#allocation2 + $0x10] sm:$0xff] %v570
    %621 = vst [vmem:[#allocation2 + $0x18] sm:$0xff] %v571
    %622 = vst [vmem:[#allocation2 + $0x20] sm:$0xff] %v572
    %623 = vst [vmem:[#allocation2 + $0x28] sm:$0xff] %v573
    %624 = vst [vmem:[#allocation2 + $0x30] sm:$0xff] %v574
    %625 = vst [vmem:[#allocation2 + $0x38] sm:$0xff] %v575
    %626 = vst [vmem:[#allocation2 + $0x40] sm:$0xff] %v576
    %627 = vst [vmem:[#allocation2 + $0x48] sm:$0xff] %v577
    %628 = vst [vmem:[#allocation2 + $0x50] sm:$0xff] %v578
    %629 = vst [vmem:[#allocation2 + $0x58] sm:$0xff] %v579
    %630 = vst [vmem:[#allocation2 + $0x60] sm:$0xff] %v580
    %631 = vst [vmem:[#allocation2 + $0x68] sm:$0xff] %v581
    %632 = vst [vmem:[#allocation2 + $0x70] sm:$0xff] %v582
    %633 = vst [vmem:[#allocation2 + $0x78] sm:$0xff] %v583
    %634 = vst [vmem:[#allocation2 + $0x80] sm:$0xff] %v584
    %635 = vst [vmem:[#allocation2 + $0x88] sm:$0xff] %v585
    %636 = vst [vmem:[#allocation2 + $0x90] sm:$0xff] %v586
    %637 = vst [vmem:[#allocation2 + $0x98] sm:$0xff] %v587
    %638 = vst [vmem:[#allocation2 + $0xa0] sm:$0xff] %v588
    %639 = vst [vmem:[#allocation2 + $0xa8] sm:$0xff] %v589
    %640 = vst [vmem:[#allocation2 + $0xb0] sm:$0xff] %v590
    %641 = vst [vmem:[#allocation2 + $0xb8] sm:$0xff] %v591
    %642 = vst [vmem:[#allocation2 + $0xc0] sm:$0xff] %v592
    %643 = vst [vmem:[#allocation2 + $0xc8] sm:$0xff] %v593
    %644 = vst [vmem:[#allocation2 + $0xd0] sm:$0xff] %v594
    %645 = vst [vmem:[#allocation2 + $0xd8] sm:$0xff] %v595
    %646 = vst [vmem:[#allocation2 + $0xe0] sm:$0xff] %v596
    %647 = vst [vmem:[#allocation2 + $0xe8] sm:$0xff] %v597
    %648 = vst [vmem:[#allocation2 + $0xf0] sm:$0xff] %v598
    %649 = vst [vmem:[#allocation2 + $0xf8] sm:$0xff] %v599
    %650 = vst [vmem:[#allocation2 + $0x100] sm:$0xff] %v600
    %651 = vst [vmem:[#allocation2 + $0x108] sm:$0xff] %v601
    %652 = vst [vmem:[#allocation2 + $0x110] sm:$0xff] %v602
    %653 = vst [vmem:[#allocation2 + $0x118] sm:$0xff] %v603
    %654 = vst [vmem:[#allocation2 + $0x120] sm:$0xff] %v604
    %655 = vst [vmem:[#allocation2 + $0x128] sm:$0xff] %v605
    %656 = vst [vmem:[#allocation2 + $0x130] sm:$0xff] %v606
    %657 = vst [vmem:[#allocation2 + $0x138] sm:$0xff] %v607
    %658 = vst [vmem:[#allocation2 + $0x140] sm:$0xff] %v608
    %659 = vst [vmem:[#allocation2 + $0x148] sm:$0xff] %v609
    %660 = vst [vmem:[#allocation2 + $0x150] sm:$0xff] %v610
    %661 = vst [vmem:[#allocation2 + $0x158] sm:$0xff] %v611
    %662 = vst [vmem:[#allocation2 + $0x160] sm:$0xff] %v612
    %663 = vst [vmem:[#allocation2 + $0x168] sm:$0xff] %v613
    %664 = vst [vmem:[#allocation2 + $0x170] sm:$0xff] %v614
    %665 = vst [vmem:[#allocation2 + $0x178] sm:$0xff] %v615
    %666 = vst [vmem:[#allocation2 + $0x180] sm:$0xff] %v616
    %667 = vst [vmem:[#allocation2 + $0x188] sm:$0xff] %v617
    // Predicated region
    $region26: #{tpu_custom_call.1} parent=1 // pred_check
      %p668 = pneg %p43
    $region27: #{tpu_custom_call.1} parent=1 // pred_check_branch
      %670 = sbr.rel (%p668) target = $region29
    $region28: #{tpu_custom_call.1} parent=1 // pred_region
      %v671 = vld [vmem:[#allocation2] sm:$0xff]
      %v672 = vld [vmem:[#allocation2 + $0x8] sm:$0xff]
      %v673 = vld [vmem:[#allocation2 + $0x10] sm:$0xff]
      %v674 = vld [vmem:[#allocation2 + $0x18] sm:$0xff]
      %v675 = vld [vmem:[#allocation2 + $0x20] sm:$0xff]
      %v676 = vld [vmem:[#allocation2 + $0x28] sm:$0xff]
      %v677 = vld [vmem:[#allocation2 + $0x30] sm:$0xff]
      %v678 = vld [vmem:[#allocation2 + $0x38] sm:$0xff]
      %v679 = vld [vmem:[#allocation2 + $0x40] sm:$0xff]
      %v680 = vld [vmem:[#allocation2 + $0x48] sm:$0xff]
      %v681 = vld [vmem:[#allocation2 + $0x50] sm:$0xff]
      %v682 = vld [vmem:[#allocation2 + $0x58] sm:$0xff]
      %v683 = vld [vmem:[#allocation2 + $0x60] sm:$0xff]
      %v684 = vld [vmem:[#allocation2 + $0x68] sm:$0xff]
      %v685 = vld [vmem:[#allocation2 + $0x70] sm:$0xff]
      %v686 = vld [vmem:[#allocation2 + $0x78] sm:$0xff]
      %v687 = vld [vmem:[#allocation2 + $0x80] sm:$0xff]
      %v688 = vld [vmem:[#allocation2 + $0x88] sm:$0xff]
      %v689 = vld [vmem:[#allocation2 + $0x90] sm:$0xff]
      %v690 = vld [vmem:[#allocation2 + $0x98] sm:$0xff]
      %v691 = vld [vmem:[#allocation2 + $0xa0] sm:$0xff]
      %v692 = vld [vmem:[#allocation2 + $0xa8] sm:$0xff]
      %v693 = vld [vmem:[#allocation2 + $0xb0] sm:$0xff]
      %v694 = vld [vmem:[#allocation2 + $0xb8] sm:$0xff]
      %v695 = vld [vmem:[#allocation2 + $0xc0] sm:$0xff]
      %v696 = vld [vmem:[#allocation2 + $0xc8] sm:$0xff]
      %v697 = vld [vmem:[#allocation2 + $0xd0] sm:$0xff]
      %v698 = vld [vmem:[#allocation2 + $0xd8] sm:$0xff]
      %v699 = vld [vmem:[#allocation2 + $0xe0] sm:$0xff]
      %v700 = vld [vmem:[#allocation2 + $0xe8] sm:$0xff]
      %v701 = vld [vmem:[#allocation2 + $0xf0] sm:$0xff]
      %v702 = vld [vmem:[#allocation2 + $0xf8] sm:$0xff]
      %v703 = vld [vmem:[#allocation2 + $0x100] sm:$0xff]
      %v704 = vld [vmem:[#allocation2 + $0x108] sm:$0xff]
      %v705 = vld [vmem:[#allocation2 + $0x110] sm:$0xff]
      %v706 = vld [vmem:[#allocation2 + $0x118] sm:$0xff]
      %v707 = vld [vmem:[#allocation2 + $0x120] sm:$0xff]
      %v708 = vld [vmem:[#allocation2 + $0x128] sm:$0xff]
      %v709 = vld [vmem:[#allocation2 + $0x130] sm:$0xff]
      %v710 = vld [vmem:[#allocation2 + $0x138] sm:$0xff]
      %v711 = vld [vmem:[#allocation2 + $0x140] sm:$0xff]
      %v712 = vld [vmem:[#allocation2 + $0x148] sm:$0xff]
      %v713 = vld [vmem:[#allocation2 + $0x150] sm:$0xff]
      %v714 = vld [vmem:[#allocation2 + $0x158] sm:$0xff]
      %v715 = vld [vmem:[#allocation2 + $0x160] sm:$0xff]
      %v716 = vld [vmem:[#allocation2 + $0x168] sm:$0xff]
      %v717 = vld [vmem:[#allocation2 + $0x170] sm:$0xff]
      %v718 = vld [vmem:[#allocation2 + $0x178] sm:$0xff]
      %v719 = vld [vmem:[#allocation2 + $0x180] sm:$0xff]
      %v720 = vld [vmem:[#allocation2 + $0x188] sm:$0xff]
      %721 = vst [vmem:[#allocation9] sm:$0xff] %v671
      %722 = vst [vmem:[#allocation9 + $0x8] sm:$0xff] %v672
      %723 = vst [vmem:[#allocation9 + $0x10] sm:$0xff] %v673
      %724 = vst [vmem:[#allocation9 + $0x18] sm:$0xff] %v674
      %725 = vst [vmem:[#allocation9 + $0x20] sm:$0xff] %v675
      %726 = vst [vmem:[#allocation9 + $0x28] sm:$0xff] %v676
      %727 = vst [vmem:[#allocation9 + $0x30] sm:$0xff] %v677
      %728 = vst [vmem:[#allocation9 + $0x38] sm:$0xff] %v678
      %729 = vst [vmem:[#allocation9 + $0x40] sm:$0xff] %v679
      %730 = vst [vmem:[#allocation9 + $0x48] sm:$0xff] %v680
      %731 = vst [vmem:[#allocation9 + $0x50] sm:$0xff] %v681
      %732 = vst [vmem:[#allocation9 + $0x58] sm:$0xff] %v682
      %733 = vst [vmem:[#allocation9 + $0x60] sm:$0xff] %v683
      %734 = vst [vmem:[#allocation9 + $0x68] sm:$0xff] %v684
      %735 = vst [vmem:[#allocation9 + $0x70] sm:$0xff] %v685
      %736 = vst [vmem:[#allocation9 + $0x78] sm:$0xff] %v686
      %737 = vst [vmem:[#allocation9 + $0x80] sm:$0xff] %v687
      %738 = vst [vmem:[#allocation9 + $0x88] sm:$0xff] %v688
      %739 = vst [vmem:[#allocation9 + $0x90] sm:$0xff] %v689
      %740 = vst [vmem:[#allocation9 + $0x98] sm:$0xff] %v690
      %741 = vst [vmem:[#allocation9 + $0xa0] sm:$0xff] %v691
      %742 = vst [vmem:[#allocation9 + $0xa8] sm:$0xff] %v692
      %743 = vst [vmem:[#allocation9 + $0xb0] sm:$0xff] %v693
      %744 = vst [vmem:[#allocation9 + $0xb8] sm:$0xff] %v694
      %745 = vst [vmem:[#allocation9 + $0xc0] sm:$0xff] %v695
      %746 = vst [vmem:[#allocation9 + $0xc8] sm:$0xff] %v696
      %747 = vst [vmem:[#allocation9 + $0xd0] sm:$0xff] %v697
      %748 = vst [vmem:[#allocation9 + $0xd8] sm:$0xff] %v698
      %749 = vst [vmem:[#allocation9 + $0xe0] sm:$0xff] %v699
      %750 = vst [vmem:[#allocation9 + $0xe8] sm:$0xff] %v700
      %751 = vst [vmem:[#allocation9 + $0xf0] sm:$0xff] %v701
      %752 = vst [vmem:[#allocation9 + $0xf8] sm:$0xff] %v702
      %753 = vst [vmem:[#allocation9 + $0x100] sm:$0xff] %v703
      %754 = vst [vmem:[#allocation9 + $0x108] sm:$0xff] %v704
      %755 = vst [vmem:[#allocation9 + $0x110] sm:$0xff] %v705
      %756 = vst [vmem:[#allocation9 + $0x118] sm:$0xff] %v706
      %757 = vst [vmem:[#allocation9 + $0x120] sm:$0xff] %v707
      %758 = vst [vmem:[#allocation9 + $0x128] sm:$0xff] %v708
      %759 = vst [vmem:[#allocation9 + $0x130] sm:$0xff] %v709
      %760 = vst [vmem:[#allocation9 + $0x138] sm:$0xff] %v710
      %761 = vst [vmem:[#allocation9 + $0x140] sm:$0xff] %v711
      %762 = vst [vmem:[#allocation9 + $0x148] sm:$0xff] %v712
      %763 = vst [vmem:[#allocation9 + $0x150] sm:$0xff] %v713
      %764 = vst [vmem:[#allocation9 + $0x158] sm:$0xff] %v714
      %765 = vst [vmem:[#allocation9 + $0x160] sm:$0xff] %v715
      %766 = vst [vmem:[#allocation9 + $0x168] sm:$0xff] %v716
      %767 = vst [vmem:[#allocation9 + $0x170] sm:$0xff] %v717
      %768 = vst [vmem:[#allocation9 + $0x178] sm:$0xff] %v718
      %769 = vst [vmem:[#allocation9 + $0x180] sm:$0xff] %v719
      %770 = vst [vmem:[#allocation9 + $0x188] sm:$0xff] %v720
      %v771 = vld [vmem:[#allocation3] sm:$0xff]
      %v772 = vld [vmem:[#allocation3 + $0x8] sm:$0xff]
      %v773 = vld [vmem:[#allocation3 + $0x10] sm:$0xff]
      %v774 = vld [vmem:[#allocation3 + $0x18] sm:$0xff]
      %v775 = vld [vmem:[#allocation3 + $0x20] sm:$0xff]
      %v776 = vld [vmem:[#allocation3 + $0x28] sm:$0xff]
      %v777 = vld [vmem:[#allocation3 + $0x30] sm:$0xff]
      %v778 = vld [vmem:[#allocation3 + $0x38] sm:$0xff]
      %v779 = vld [vmem:[#allocation3 + $0x40] sm:$0xff]
      %v780 = vld [vmem:[#allocation3 + $0x48] sm:$0xff]
      %v781 = vld [vmem:[#allocation3 + $0x50] sm:$0xff]
      %v782 = vld [vmem:[#allocation3 + $0x58] sm:$0xff]
      %v783 = vld [vmem:[#allocation3 + $0x60] sm:$0xff]
      %v784 = vld [vmem:[#allocation3 + $0x68] sm:$0xff]
      %v785 = vld [vmem:[#allocation3 + $0x70] sm:$0xff]
      %v786 = vld [vmem:[#allocation3 + $0x78] sm:$0xff]
      %v787 = vld [vmem:[#allocation3 + $0x80] sm:$0xff]
      %v788 = vld [vmem:[#allocation3 + $0x88] sm:$0xff]
      %v789 = vld [vmem:[#allocation3 + $0x90] sm:$0xff]
      %v790 = vld [vmem:[#allocation3 + $0x98] sm:$0xff]
      %v791 = vld [vmem:[#allocation3 + $0xa0] sm:$0xff]
      %v792 = vld [vmem:[#allocation3 + $0xa8] sm:$0xff]
      %v793 = vld [vmem:[#allocation3 + $0xb0] sm:$0xff]
      %v794 = vld [vmem:[#allocation3 + $0xb8] sm:$0xff]
      %v795 = vld [vmem:[#allocation3 + $0xc0] sm:$0xff]
      %v796 = vmul.f32 %v671, %v671
      %v797 = vmul.f32 %v672, %v672
      %v798 = vmul.f32 %v673, %v673
      %v799 = vmul.f32 %v674, %v674
      %v800 = vmul.f32 %v675, %v675
      %v801 = vmul.f32 %v676, %v676
      %v802 = vmul.f32 %v677, %v677
      %v803 = vmul.f32 %v678, %v678
      %v804 = vmul.f32 %v679, %v679
      %v805 = vmul.f32 %v680, %v680
      %v806 = vmul.f32 %v681, %v681
      %v807 = vmul.f32 %v682, %v682
      %v808 = vmul.f32 %v683, %v683
      %v809 = vmul.f32 %v684, %v684
      %v810 = vmul.f32 %v685, %v685
      %v811 = vmul.f32 %v686, %v686
      %v812 = vmul.f32 %v687, %v687
      %v813 = vmul.f32 %v688, %v688
      %v814 = vmul.f32 %v689, %v689
      %v815 = vmul.f32 %v690, %v690
      %v816 = vmul.f32 %v691, %v691
      %v817 = vmul.f32 %v692, %v692
      %v818 = vmul.f32 %v693, %v693
      %v819 = vmul.f32 %v694, %v694
      %v820 = vmul.f32 %v695, %v695
      %v821 = vmul.f32 %v696, %v696
      %v822 = vmul.f32 %v697, %v697
      %v823 = vmul.f32 %v698, %v698
      %v824 = vmul.f32 %v699, %v699
      %v825 = vmul.f32 %v700, %v700
      %v826 = vmul.f32 %v701, %v701
      %v827 = vmul.f32 %v702, %v702
      %v828 = vmul.f32 %v703, %v703
      %v829 = vmul.f32 %v704, %v704
      %v830 = vmul.f32 %v705, %v705
      %v831 = vmul.f32 %v706, %v706
      %v832 = vmul.f32 %v707, %v707
      %v833 = vmul.f32 %v708, %v708
      %v834 = vmul.f32 %v709, %v709
      %v835 = vmul.f32 %v710, %v710
      %v836 = vmul.f32 %v711, %v711
      %v837 = vmul.f32 %v712, %v712
      %v838 = vmul.f32 %v713, %v713
      %v839 = vmul.f32 %v714, %v714
      %v840 = vmul.f32 %v715, %v715
      %v841 = vmul.f32 %v716, %v716
      %v842 = vmul.f32 %v717, %v717
      %v843 = vmul.f32 %v718, %v718
      %v844 = vmul.f32 %v719, %v719
      %v845 = vmul.f32 %v720, %v720
      %v846 = vadd.f32 %v796, %v797
      %847 = vadd.xlane.f32.xlu0 %v846
      %v848 = vpop.xlane.xlu0 %847
      %v849 = vadd.f32 %v798, %v799
      %850 = vadd.xlane.f32.xlu0 %v849
      %v851 = vpop.xlane.xlu0 %850
      %v852 = vadd.f32 %v800, %v801
      %853 = vadd.xlane.f32.xlu0 %v852
      %v854 = vpop.xlane.xlu0 %853
      %v855 = vadd.f32 %v802, %v803
      %856 = vadd.xlane.f32.xlu0 %v855
      %v857 = vpop.xlane.xlu0 %856
      %v858 = vadd.f32 %v804, %v805
      %859 = vadd.xlane.f32.xlu0 %v858
      %v860 = vpop.xlane.xlu0 %859
      %v861 = vadd.f32 %v806, %v807
      %862 = vadd.xlane.f32.xlu0 %v861
      %v863 = vpop.xlane.xlu0 %862
      %v864 = vadd.f32 %v808, %v809
      %865 = vadd.xlane.f32.xlu0 %v864
      %v866 = vpop.xlane.xlu0 %865
      %v867 = vadd.f32 %v810, %v811
      %868 = vadd.xlane.f32.xlu0 %v867
      %v869 = vpop.xlane.xlu0 %868
      %v870 = vadd.f32 %v812, %v813
      %871 = vadd.xlane.f32.xlu0 %v870
      %v872 = vpop.xlane.xlu0 %871
      %v873 = vadd.f32 %v814, %v815
      %874 = vadd.xlane.f32.xlu0 %v873
      %v875 = vpop.xlane.xlu0 %874
      %v876 = vadd.f32 %v816, %v817
      %877 = vadd.xlane.f32.xlu0 %v876
      %v878 = vpop.xlane.xlu0 %877
      %v879 = vadd.f32 %v818, %v819
      %880 = vadd.xlane.f32.xlu0 %v879
      %v881 = vpop.xlane.xlu0 %880
      %v882 = vadd.f32 %v820, %v821
      %883 = vadd.xlane.f32.xlu0 %v882
      %v884 = vpop.xlane.xlu0 %883
      %v885 = vadd.f32 %v822, %v823
      %886 = vadd.xlane.f32.xlu0 %v885
      %v887 = vpop.xlane.xlu0 %886
      %v888 = vadd.f32 %v824, %v825
      %889 = vadd.xlane.f32.xlu0 %v888
      %v890 = vpop.xlane.xlu0 %889
      %v891 = vadd.f32 %v826, %v827
      %892 = vadd.xlane.f32.xlu0 %v891
      %v893 = vpop.xlane.xlu0 %892
      %v894 = vadd.f32 %v828, %v829
      %895 = vadd.xlane.f32.xlu0 %v894
      %v896 = vpop.xlane.xlu0 %895
      %v897 = vadd.f32 %v830, %v831
      %898 = vadd.xlane.f32.xlu0 %v897
      %v899 = vpop.xlane.xlu0 %898
      %v900 = vadd.f32 %v832, %v833
      %901 = vadd.xlane.f32.xlu0 %v900
      %v902 = vpop.xlane.xlu0 %901
      %v903 = vadd.f32 %v834, %v835
      %904 = vadd.xlane.f32.xlu0 %v903
      %v905 = vpop.xlane.xlu0 %904
      %v906 = vadd.f32 %v836, %v837
      %907 = vadd.xlane.f32.xlu0 %v906
      %v908 = vpop.xlane.xlu0 %907
      %v909 = vadd.f32 %v838, %v839
      %910 = vadd.xlane.f32.xlu0 %v909
      %v911 = vpop.xlane.xlu0 %910
      %v912 = vadd.f32 %v840, %v841
      %913 = vadd.xlane.f32.xlu0 %v912
      %v914 = vpop.xlane.xlu0 %913
      %v915 = vadd.f32 %v842, %v843
      %916 = vadd.xlane.f32.xlu0 %v915
      %v917 = vpop.xlane.xlu0 %916
      %v918 = vadd.f32 %v844, %v845
      %919 = vadd.xlane.f32.xlu0 %v918
      %v920 = vpop.xlane.xlu0 %919
      %v921 = vadd.f32 %v771, %v848
      %v922 = vadd.f32 %v772, %v851
      %v923 = vadd.f32 %v773, %v854
      %v924 = vadd.f32 %v774, %v857
      %v925 = vadd.f32 %v775, %v860
      %v926 = vadd.f32 %v776, %v863
      %v927 = vadd.f32 %v777, %v866
      %v928 = vadd.f32 %v778, %v869
      %v929 = vadd.f32 %v779, %v872
      %v930 = vadd.f32 %v780, %v875
      %v931 = vadd.f32 %v781, %v878
      %v932 = vadd.f32 %v782, %v881
      %v933 = vadd.f32 %v783, %v884
      %v934 = vadd.f32 %v784, %v887
      %v935 = vadd.f32 %v785, %v890
      %v936 = vadd.f32 %v786, %v893
      %v937 = vadd.f32 %v787, %v896
      %v938 = vadd.f32 %v788, %v899
      %v939 = vadd.f32 %v789, %v902
      %v940 = vadd.f32 %v790, %v905
      %v941 = vadd.f32 %v791, %v908
      %v942 = vadd.f32 %v792, %v911
      %v943 = vadd.f32 %v793, %v914
      %v944 = vadd.f32 %v794, %v917
      %v945 = vadd.f32 %v795, %v920
      %vm946 = vcmask 7168
      %947 = vst.msk [vmem:[#allocation3] sm:$0xff] %vm946, %v921
      %948 = vst.msk [vmem:[#allocation3 + $0x8] sm:$0xff] %vm946, %v922
      %949 = vst.msk [vmem:[#allocation3 + $0x10] sm:$0xff] %vm946, %v923
      %950 = vst.msk [vmem:[#allocation3 + $0x18] sm:$0xff] %vm946, %v924
      %951 = vst.msk [vmem:[#allocation3 + $0x20] sm:$0xff] %vm946, %v925
      %952 = vst.msk [vmem:[#allocation3 + $0x28] sm:$0xff] %vm946, %v926
      %953 = vst.msk [vmem:[#allocation3 + $0x30] sm:$0xff] %vm946, %v927
      %954 = vst.msk [vmem:[#allocation3 + $0x38] sm:$0xff] %vm946, %v928
      %955 = vst.msk [vmem:[#allocation3 + $0x40] sm:$0xff] %vm946, %v929
      %956 = vst.msk [vmem:[#allocation3 + $0x48] sm:$0xff] %vm946, %v930
      %957 = vst.msk [vmem:[#allocation3 + $0x50] sm:$0xff] %vm946, %v931
      %958 = vst.msk [vmem:[#allocation3 + $0x58] sm:$0xff] %vm946, %v932
      %959 = vst.msk [vmem:[#allocation3 + $0x60] sm:$0xff] %vm946, %v933
      %960 = vst.msk [vmem:[#allocation3 + $0x68] sm:$0xff] %vm946, %v934
      %961 = vst.msk [vmem:[#allocation3 + $0x70] sm:$0xff] %vm946, %v935
      %962 = vst.msk [vmem:[#allocation3 + $0x78] sm:$0xff] %vm946, %v936
      %963 = vst.msk [vmem:[#allocation3 + $0x80] sm:$0xff] %vm946, %v937
      %964 = vst.msk [vmem:[#allocation3 + $0x88] sm:$0xff] %vm946, %v938
      %965 = vst.msk [vmem:[#allocation3 + $0x90] sm:$0xff] %vm946, %v939
      %966 = vst.msk [vmem:[#allocation3 + $0x98] sm:$0xff] %vm946, %v940
      %967 = vst.msk [vmem:[#allocation3 + $0xa0] sm:$0xff] %vm946, %v941
      %968 = vst.msk [vmem:[#allocation3 + $0xa8] sm:$0xff] %vm946, %v942
      %969 = vst.msk [vmem:[#allocation3 + $0xb0] sm:$0xff] %vm946, %v943
      %970 = vst.msk [vmem:[#allocation3 + $0xb8] sm:$0xff] %vm946, %v944
      %971 = vst.msk [vmem:[#allocation3 + $0xc0] sm:$0xff] %vm946, %v945
    $region29: #{tpu_custom_call.1} parent=1 // pred_fallthru
      _
    // Predicated region
    $region30: #{tpu_custom_call.1} parent=1 // pred_check
      _
    $region31: #{tpu_custom_call.1} parent=1 // pred_check_branch
      %973 = sbr.rel (%p98) target = $region33
    $region32: #{tpu_custom_call.1} parent=1 // pred_region
      %v974 = vld [vmem:[#allocation3] sm:$0xff]
      %v975 = vld [vmem:[#allocation3 + $0x8] sm:$0xff]
      %v976 = vld [vmem:[#allocation3 + $0x10] sm:$0xff]
      %v977 = vld [vmem:[#allocation3 + $0x18] sm:$0xff]
      %v978 = vld [vmem:[#allocation3 + $0x20] sm:$0xff]
      %v979 = vld [vmem:[#allocation3 + $0x28] sm:$0xff]
      %v980 = vld [vmem:[#allocation3 + $0x30] sm:$0xff]
      %v981 = vld [vmem:[#allocation3 + $0x38] sm:$0xff]
      %v982 = vld [vmem:[#allocation3 + $0x40] sm:$0xff]
      %v983 = vld [vmem:[#allocation3 + $0x48] sm:$0xff]
      %v984 = vld [vmem:[#allocation3 + $0x50] sm:$0xff]
      %v985 = vld [vmem:[#allocation3 + $0x58] sm:$0xff]
      %v986 = vld [vmem:[#allocation3 + $0x60] sm:$0xff]
      %v987 = vld [vmem:[#allocation3 + $0x68] sm:$0xff]
      %v988 = vld [vmem:[#allocation3 + $0x70] sm:$0xff]
      %v989 = vld [vmem:[#allocation3 + $0x78] sm:$0xff]
      %v990 = vld [vmem:[#allocation3 + $0x80] sm:$0xff]
      %v991 = vld [vmem:[#allocation3 + $0x88] sm:$0xff]
      %v992 = vld [vmem:[#allocation3 + $0x90] sm:$0xff]
      %v993 = vld [vmem:[#allocation3 + $0x98] sm:$0xff]
      %v994 = vld [vmem:[#allocation3 + $0xa0] sm:$0xff]
      %v995 = vld [vmem:[#allocation3 + $0xa8] sm:$0xff]
      %v996 = vld [vmem:[#allocation3 + $0xb0] sm:$0xff]
      %v997 = vld [vmem:[#allocation3 + $0xb8] sm:$0xff]
      %v998 = vld [vmem:[#allocation3 + $0xc0] sm:$0xff]
      %v999 = vadd.f32 %v974, 1e-12
      %v1000 = vadd.f32 %v975, 1e-12
      %v1001 = vadd.f32 %v976, 1e-12
      %v1002 = vadd.f32 %v977, 1e-12
      %v1003 = vadd.f32 %v978, 1e-12
      %v1004 = vadd.f32 %v979, 1e-12
      %v1005 = vadd.f32 %v980, 1e-12
      %v1006 = vadd.f32 %v981, 1e-12
      %v1007 = vadd.f32 %v982, 1e-12
      %v1008 = vadd.f32 %v983, 1e-12
      %v1009 = vadd.f32 %v984, 1e-12
      %v1010 = vadd.f32 %v985, 1e-12
      %v1011 = vadd.f32 %v986, 1e-12
      %v1012 = vadd.f32 %v987, 1e-12
      %v1013 = vadd.f32 %v988, 1e-12
      %v1014 = vadd.f32 %v989, 1e-12
      %v1015 = vadd.f32 %v990, 1e-12
      %v1016 = vadd.f32 %v991, 1e-12
      %v1017 = vadd.f32 %v992, 1e-12
      %v1018 = vadd.f32 %v993, 1e-12
      %v1019 = vadd.f32 %v994, 1e-12
      %v1020 = vadd.f32 %v995, 1e-12
      %v1021 = vadd.f32 %v996, 1e-12
      %v1022 = vadd.f32 %v997, 1e-12
      %v1023 = vadd.f32 %v998, 1e-12
      %v1024 = vrsqrt.pop %v999
      %v1025 = vrsqrt.pop %v1000
      %v1026 = vrsqrt.pop %v1001
      %v1027 = vrsqrt.pop %v1002
      %v1028 = vrsqrt.pop %v1003
      %v1029 = vrsqrt.pop %v1004
      %v1030 = vrsqrt.pop %v1005
      %v1031 = vrsqrt.pop %v1006
      %v1032 = vrsqrt.pop %v1007
      %v1033 = vrsqrt.pop %v1008
      %v1034 = vrsqrt.pop %v1009
      %v1035 = vrsqrt.pop %v1010
      %v1036 = vrsqrt.pop %v1011
      %v1037 = vrsqrt.pop %v1012
      %v1038 = vrsqrt.pop %v1013
      %v1039 = vrsqrt.pop %v1014
      %v1040 = vrsqrt.pop %v1015
      %v1041 = vrsqrt.pop %v1016
      %v1042 = vrsqrt.pop %v1017
      %v1043 = vrsqrt.pop %v1018
      %v1044 = vrsqrt.pop %v1019
      %v1045 = vrsqrt.pop %v1020
      %v1046 = vrsqrt.pop %v1021
      %v1047 = vrsqrt.pop %v1022
      %v1048 = vrsqrt.pop %v1023
      %vm1049 = vcmask 7168
      %1050 = vst.msk [vmem:[%s3] sm:$0xff] %vm1049, %v1024
      %1051 = vst.msk [vmem:[%s3 + $0x8] sm:$0xff] %vm1049, %v1025
      %1052 = vst.msk [vmem:[%s3 + $0x10] sm:$0xff] %vm1049, %v1026
      %1053 = vst.msk [vmem:[%s3 + $0x18] sm:$0xff] %vm1049, %v1027
      %1054 = vst.msk [vmem:[%s3 + $0x20] sm:$0xff] %vm1049, %v1028
      %1055 = vst.msk [vmem:[%s3 + $0x28] sm:$0xff] %vm1049, %v1029
      %1056 = vst.msk [vmem:[%s3 + $0x30] sm:$0xff] %vm1049, %v1030
      %1057 = vst.msk [vmem:[%s3 + $0x38] sm:$0xff] %vm1049, %v1031
      %1058 = vst.msk [vmem:[%s3 + $0x40] sm:$0xff] %vm1049, %v1032
      %1059 = vst.msk [vmem:[%s3 + $0x48] sm:$0xff] %vm1049, %v1033
      %1060 = vst.msk [vmem:[%s3 + $0x50] sm:$0xff] %vm1049, %v1034
      %1061 = vst.msk [vmem:[%s3 + $0x58] sm:$0xff] %vm1049, %v1035
      %1062 = vst.msk [vmem:[%s3 + $0x60] sm:$0xff] %vm1049, %v1036
      %1063 = vst.msk [vmem:[%s3 + $0x68] sm:$0xff] %vm1049, %v1037
      %1064 = vst.msk [vmem:[%s3 + $0x70] sm:$0xff] %vm1049, %v1038
      %1065 = vst.msk [vmem:[%s3 + $0x78] sm:$0xff] %vm1049, %v1039
      %1066 = vst.msk [vmem:[%s3 + $0x80] sm:$0xff] %vm1049, %v1040
      %1067 = vst.msk [vmem:[%s3 + $0x88] sm:$0xff] %vm1049, %v1041
      %1068 = vst.msk [vmem:[%s3 + $0x90] sm:$0xff] %vm1049, %v1042
      %1069 = vst.msk [vmem:[%s3 + $0x98] sm:$0xff] %vm1049, %v1043
      %1070 = vst.msk [vmem:[%s3 + $0xa0] sm:$0xff] %vm1049, %v1044
      %1071 = vst.msk [vmem:[%s3 + $0xa8] sm:$0xff] %vm1049, %v1045
      %1072 = vst.msk [vmem:[%s3 + $0xb0] sm:$0xff] %vm1049, %v1046
      %1073 = vst.msk [vmem:[%s3 + $0xb8] sm:$0xff] %vm1049, %v1047
      %1074 = vst.msk [vmem:[%s3 + $0xc0] sm:$0xff] %vm1049, %v1048
    $region33: #{tpu_custom_call.1} parent=1 // pred_fallthru
      _
    // Predicated region
    $region34: #{tpu_custom_call.1} parent=1 // pred_check
      _
    $region35: #{tpu_custom_call.1} parent=1 // pred_check_branch
      %1076 = sbr.rel (0) target = $region37
    $region36: #{tpu_custom_call.1} parent=1 // pred_region
      %s1078 = ssub.s32 6400, 6400
      %1079 = vsyncadd [#allocation6], %s1078
      %s1080 = sshll.u32 [#allocation9], 4
      %s1081 = int_to_ptr.vmem [resolvable:$true] %s1080
      %1086 = dma.vmem_to_hbm [thread:$0]  %s1081, 6400, %s2, [#allocation6], 256, 256, 16
    $region37: #{tpu_custom_call.1} parent=1 // pred_fallthru
      _
    // Predicated region
    $region38: #{tpu_custom_call.1} parent=1 // pred_check
      _
    $region39: #{tpu_custom_call.1} parent=1 // pred_check_branch
      %1088 = sbr.rel (0) target = $region41
    $region40: #{tpu_custom_call.1} parent=1 // pred_region
      _
    $region41: #{tpu_custom_call.1} parent=1 // pred_fallthru
      _
    // Predicated region
    $region42: #{tpu_custom_call.1} parent=1 // pred_check
      _
    $region43: #{tpu_custom_call.1} parent=1 // pred_check_branch
      %1090 = sbr.rel (0) target = $region45
    $region44: #{tpu_custom_call.1} parent=1 // pred_region
      %1091 = dma.done [#allocation6], 6400
    $region45: #{tpu_custom_call.1} parent=1 // pred_fallthru
      _
    // Predicated region
    $region46: #{tpu_custom_call.1} parent=1 // pred_check
      _
    $region47: #{tpu_custom_call.1} parent=1 // pred_check_branch
      %1093 = sbr.rel (0) target = $region49
    $region48: #{tpu_custom_call.1} parent=1 // pred_region
      _
    $region49: #{tpu_custom_call.1} parent=1 // pred_fallthru
      _
    %1094 = vsyncpa [#allocation5], 1
    %1095 = vsyncpa [#allocation8], 1
    %1096 = vsyncpa [#allocation6], 1

</llo_original>
